<compile_context>
chip_gen: v6e
topology: v6e:2x2x1
jax: 0.10.0
libtpu: 0.0.40
codegen_flags: <defaults>
</compile_context>

<pallas_src>
import functools

import jax
import jax.numpy as jnp
from jax.experimental import pallas as pl
from jax.experimental.pallas import tpu as pltpu

LANES = 512        # lane (last) axis of the packed layout, multiple of 128
MAX_BLOCK_R = 512  # sublane rows per grid step; 512x512 f32 in+out = ~4 MiB/step


def _tiling(batch):
    """Pick (rows, block_r) so rows*LANES >= batch, rows % block_r == 0,
    block_r % 8 == 0, per-step payload stays VMEM-friendly, and the grid has
    >= 2 steps when there is enough data (v7x megacore)."""
    rows = -(-batch // LANES)                 # ceil(batch / LANES)
    rows = max(8, -(-rows // 8) * 8)          # round up to a multiple of 8
    block_r = min(MAX_BLOCK_R, rows)
    if rows == block_r and rows >= 16:        # force >= 2 parallel grid steps
        block_r = max(8, (rows // 2 // 8) * 8)
    rows = -(-rows // block_r) * block_r      # rows multiple of block_r
    return rows, block_r


def mlp_kernel(params_ref, x_ref, o_ref):
    # params_ref: SMEM f32[11] = [w1(3,2) row-major, b1(2), w2(2,1), b2(1)]
    # x_ref:      VMEM f32[3, block_r, LANES]  (features, batch-rows, batch-lanes)
    # o_ref:      VMEM f32[block_r, LANES]
    x0 = x_ref[0]            # (block_r, LANES) -- dense slabs, full vregs
    x1 = x_ref[1]
    x2 = x_ref[2]

    # fc1 weights (in, out) layout: w1[i, j] = params[2*i + j]
    w1_00 = params_ref[0]; w1_01 = params_ref[1]
    w1_10 = params_ref[2]; w1_11 = params_ref[3]
    w1_20 = params_ref[4]; w1_21 = params_ref[5]
    b1_0 = params_ref[6];  b1_1 = params_ref[7]
    # fc2 weights (in, out) layout: w2[k, 0] = params[8 + k]
    w2_0 = params_ref[8];  w2_1 = params_ref[9]
    b2_0 = params_ref[10]

    # Layer 1: unrolled broadcast FMAs on the VPU; hidden stays in vregs.
    h0 = jax.nn.sigmoid(x0 * w1_00 + x1 * w1_10 + x2 * w1_20 + b1_0)
    h1 = jax.nn.sigmoid(x0 * w1_01 + x1 * w1_11 + x2 * w1_21 + b1_1)

    # Layer 2: 2-wide contraction; lane- and sublane-dense store.
    o_ref[...] = jax.nn.sigmoid(h0 * w2_0 + h1 * w2_1 + b2_0)


@functools.partial(jax.jit, static_argnames=())
def simple_nn_forward(x, w1, b1, w2, b2):
    """x: (B, 3) f32. w1: (3,2), b1: (2,), w2: (2,1), b2: (1,). Returns (B, 1)."""
    B = x.shape[0]
    rows, block_r = _tiling(B)
    b_pad = rows * LANES

    # Relayout (fused under jit): (B,3) -> (3,B) -> pad -> (3, rows, LANES).
    # The reshape from (3, b_pad) to (3, rows, LANES) is a contiguous view.
    x_t = jnp.asarray(x, jnp.float32).T                           # (3, B)
    if b_pad != B:
        x_t = jnp.pad(x_t, ((0, 0), (0, b_pad - B)))              # (3, b_pad)
    x_packed = x_t.reshape(3, rows, LANES)

    params = jnp.concatenate([
        jnp.asarray(w1, jnp.float32).reshape(-1),
        jnp.asarray(b1, jnp.float32).reshape(-1),
        jnp.asarray(w2, jnp.float32).reshape(-1),
        jnp.asarray(b2, jnp.float32).reshape(-1),
    ])                                                            # (11,)

    grid = (rows // block_r,)
    out_packed = pl.pallas_call(
        mlp_kernel,
        out_shape=jax.ShapeDtypeStruct((rows, LANES), jnp.float32),
        grid=grid,
        in_specs=[
            pl.BlockSpec(memory_space=pltpu.MemorySpace.SMEM),        # params
            pl.BlockSpec((3, block_r, LANES), lambda i: (0, i, 0)),   # x tile
        ],
        out_specs=pl.BlockSpec((block_r, LANES), lambda i: (i, 0)),
        compiler_params=pltpu.CompilerParams(
            dimension_semantics=("parallel",),
        ),
    )(params, x_packed)

    # Contiguous reshape + slice (no transpose): batch index b == rows*LANES flat.
    return out_packed.reshape(b_pad)[:B].reshape(B, 1)


def init_params(key):
    # Deterministic init mimicking nn.Linear's U(-1/sqrt(fan_in), 1/sqrt(fan_in)).
    k1, k2, k3, k4 = jax.random.split(key, 4)
    bound1 = 1.0 / jnp.sqrt(3.0)
    bound2 = 1.0 / jnp.sqrt(2.0)
    w1 = jax.random.uniform(k1, (3, 2), jnp.float32, -bound1, bound1)  # (in, out)
    b1 = jax.random.uniform(k2, (2,), jnp.float32, -bound1, bound1)
    w2 = jax.random.uniform(k3, (2, 1), jnp.float32, -bound2, bound2)
    b2 = jax.random.uniform(k4, (1,), jnp.float32, -bound2, bound2)
    return w1, b1, w2, b2


if __name__ == "__main__":
    key = jax.random.PRNGKey(0)
    kx, kp = jax.random.split(key)
    B = 8
    x = jax.random.normal(kx, (B, 3), jnp.float32)
    w1, b1, w2, b2 = init_params(kp)

    out = simple_nn_forward(x, w1, b1, w2, b2)
    out = jax.block_until_ready(out)

    # Reference check in plain JAX (same math as the PyTorch forward).
    ref = jax.nn.sigmoid(jax.nn.sigmoid(x @ w1 + b1) @ w2 + b2)
    assert out.shape == (B, 1)
    assert jnp.allclose(out, ref, atol=1e-5, rtol=1e-5)

    print("KERNEL_OK")
</pallas_src>

<mosaic_0001>
module attributes {stable_mosaic.version = 11 : i64} {
  func.func @mlp_kernel(%arg0: i32, %arg1: memref<11xf32, #tpu.memory_space<smem>>, %arg2: memref<3x8x512xf32, #tpu.memory_space<vmem>>, %arg3: memref<8x512xf32, #tpu.memory_space<vmem>>) attributes {dimension_semantics = [#tpu.dimension_semantics<parallel>], iteration_bounds = array<i64: 1>, scalar_prefetch = 0 : i64, scratch_operands = 0 : i64, tpu.core_type = #tpu.core_type<tc>, window_params = [{transform_indices = @transform_0, window_bounds = array<i64: 11>}, {transform_indices = @transform_1, window_bounds = array<i64: 3, 8, 512>}, {transform_indices = @transform_2, window_bounds = array<i64: 8, 512>}]} {
    %c0 = arith.constant 0 : index
    %c0_0 = arith.constant 0 : index
    %c0_1 = arith.constant 0 : index
    %0 = vector.load %arg2[%c0, %c0_0, %c0_1] : memref<3x8x512xf32, #tpu.memory_space<vmem>>, vector<1x8x512xf32>
    %1 = vector.shape_cast %0 : vector<1x8x512xf32> to vector<8x512xf32>
    %c1 = arith.constant 1 : index
    %c0_2 = arith.constant 0 : index
    %c0_3 = arith.constant 0 : index
    %2 = vector.load %arg2[%c1, %c0_2, %c0_3] : memref<3x8x512xf32, #tpu.memory_space<vmem>>, vector<1x8x512xf32>
    %3 = vector.shape_cast %2 : vector<1x8x512xf32> to vector<8x512xf32>
    %c2 = arith.constant 2 : index
    %c0_4 = arith.constant 0 : index
    %c0_5 = arith.constant 0 : index
    %4 = vector.load %arg2[%c2, %c0_4, %c0_5] : memref<3x8x512xf32, #tpu.memory_space<vmem>>, vector<1x8x512xf32>
    %5 = vector.shape_cast %4 : vector<1x8x512xf32> to vector<8x512xf32>
    %c0_6 = arith.constant 0 : index
    %6 = memref.load %arg1[%c0_6] : memref<11xf32, #tpu.memory_space<smem>>
    %c1_7 = arith.constant 1 : index
    %7 = memref.load %arg1[%c1_7] : memref<11xf32, #tpu.memory_space<smem>>
    %c2_8 = arith.constant 2 : index
    %8 = memref.load %arg1[%c2_8] : memref<11xf32, #tpu.memory_space<smem>>
    %c3 = arith.constant 3 : index
    %9 = memref.load %arg1[%c3] : memref<11xf32, #tpu.memory_space<smem>>
    %c4 = arith.constant 4 : index
    %10 = memref.load %arg1[%c4] : memref<11xf32, #tpu.memory_space<smem>>
    %c5 = arith.constant 5 : index
    %11 = memref.load %arg1[%c5] : memref<11xf32, #tpu.memory_space<smem>>
    %c6 = arith.constant 6 : index
    %12 = memref.load %arg1[%c6] : memref<11xf32, #tpu.memory_space<smem>>
    %c7 = arith.constant 7 : index
    %13 = memref.load %arg1[%c7] : memref<11xf32, #tpu.memory_space<smem>>
    %c8 = arith.constant 8 : index
    %14 = memref.load %arg1[%c8] : memref<11xf32, #tpu.memory_space<smem>>
    %c9 = arith.constant 9 : index
    %15 = memref.load %arg1[%c9] : memref<11xf32, #tpu.memory_space<smem>>
    %c10 = arith.constant 10 : index
    %16 = memref.load %arg1[%c10] : memref<11xf32, #tpu.memory_space<smem>>
    %17 = vector.broadcast %6 : f32 to vector<8x512xf32>
    %18 = arith.mulf %1, %17 : vector<8x512xf32>
    %19 = vector.broadcast %8 : f32 to vector<8x512xf32>
    %20 = arith.mulf %3, %19 : vector<8x512xf32>
    %21 = arith.addf %18, %20 : vector<8x512xf32>
    %22 = vector.broadcast %10 : f32 to vector<8x512xf32>
    %23 = arith.mulf %5, %22 : vector<8x512xf32>
    %24 = arith.addf %21, %23 : vector<8x512xf32>
    %25 = vector.broadcast %12 : f32 to vector<8x512xf32>
    %26 = arith.addf %24, %25 : vector<8x512xf32>
    %27 = arith.negf %26 : vector<8x512xf32>
    %28 = math.exp %27 : vector<8x512xf32>
    %cst = arith.constant 1.000000e+00 : f32
    %29 = vector.broadcast %cst : f32 to vector<8x512xf32>
    %30 = arith.addf %29, %28 : vector<8x512xf32>
    %31 = arith.divf %29, %30 : vector<8x512xf32>
    %32 = vector.broadcast %7 : f32 to vector<8x512xf32>
    %33 = arith.mulf %1, %32 : vector<8x512xf32>
    %34 = vector.broadcast %9 : f32 to vector<8x512xf32>
    %35 = arith.mulf %3, %34 : vector<8x512xf32>
    %36 = arith.addf %33, %35 : vector<8x512xf32>
    %37 = vector.broadcast %11 : f32 to vector<8x512xf32>
    %38 = arith.mulf %5, %37 : vector<8x512xf32>
    %39 = arith.addf %36, %38 : vector<8x512xf32>
    %40 = vector.broadcast %13 : f32 to vector<8x512xf32>
    %41 = arith.addf %39, %40 : vector<8x512xf32>
    %42 = arith.negf %41 : vector<8x512xf32>
    %43 = math.exp %42 : vector<8x512xf32>
    %cst_9 = arith.constant 1.000000e+00 : f32
    %44 = vector.broadcast %cst_9 : f32 to vector<8x512xf32>
    %45 = arith.addf %44, %43 : vector<8x512xf32>
    %46 = arith.divf %44, %45 : vector<8x512xf32>
    %47 = vector.broadcast %14 : f32 to vector<8x512xf32>
    %48 = arith.mulf %31, %47 : vector<8x512xf32>
    %49 = vector.broadcast %15 : f32 to vector<8x512xf32>
    %50 = arith.mulf %46, %49 : vector<8x512xf32>
    %51 = arith.addf %48, %50 : vector<8x512xf32>
    %52 = vector.broadcast %16 : f32 to vector<8x512xf32>
    %53 = arith.addf %51, %52 : vector<8x512xf32>
    %54 = arith.negf %53 : vector<8x512xf32>
    %55 = math.exp %54 : vector<8x512xf32>
    %cst_10 = arith.constant 1.000000e+00 : f32
    %56 = vector.broadcast %cst_10 : f32 to vector<8x512xf32>
    %57 = arith.addf %56, %55 : vector<8x512xf32>
    %58 = arith.divf %56, %57 : vector<8x512xf32>
    %c0_11 = arith.constant 0 : index
    %c0_12 = arith.constant 0 : index
    %59 = vector.load %arg3[%c0_11, %c0_12] : memref<8x512xf32, #tpu.memory_space<vmem>>, vector<8x512xf32>
    tpu.vector_store %arg3[%c0_11, %c0_12], %58 {strides = array<i32>} : memref<8x512xf32, #tpu.memory_space<vmem>>, vector<8x512xf32>,
    return
  }
  func.func @transform_0(%arg0: i32) -> i32 {
    %c0_i32 = arith.constant 0 : i32
    %c0_i32_0 = arith.constant 0 : i32
    return %c0_i32 : i32
  }
  func.func @transform_1(%arg0: i32) -> (i32, i32, i32) {
    %c0_i32 = arith.constant 0 : i32
    %c0_i32_0 = arith.constant 0 : i32
    %c0_i32_1 = arith.constant 0 : i32
    return %c0_i32, %arg0, %c0_i32_0 : i32, i32, i32
  }
  func.func @transform_2(%arg0: i32) -> (i32, i32) {
    %c0_i32 = arith.constant 0 : i32
    %c0_i32_0 = arith.constant 0 : i32
    return %arg0, %c0_i32 : i32, i32
  }
}

</mosaic_0001>

<llo_original>
// kernel: simple_nn_forward.1
$region0: #{simple_nn_forward.1}
  #allocation0 [shape = 'u32[]', space=smem, size = 0x4, offset = 0x4, fixed_abs, tag = 'smem constant byte address 0x4 - core index']
  #allocation1 [shape = 'u32[144,128]{1,0:T(1,128)}', space=vmem, size = 0x12000, scoped, tag = 'internal scratch']
  %s0 = inlined_call_operand.vmem [shape: f32[11], index: 0, kind: input, shape index: {}]
  %s1 = inlined_call_operand.vmem [shape: f32[3,8,512], index: 1, kind: input, shape index: {}]
  %s2 = inlined_call_operand.vmem [shape: f32[8,512], index: 2, kind: output, shape index: {}]
  %s3 = sld [smem:[#allocation0]]
  $region22: #{simple_nn_forward.1} parent=0
    _
  %s5 = ssub.s32 1, %s3
  %s6 = scalar_select 0, %s5, %s3
  $region1: #{simple_nn_forward.1} parent=0
    #allocation2 [shape = 'u8[512]{0}', space=smem, size = 0x200, scoped, tag = 'input window, operand 0, single buffered']
    #allocation3 [shape = 's32[1]{0}', space=sflag, size = 0x4, scoped, tag = 'scoped memory for simple_nn_forward.1']
    %7 = vsyncpa [#allocation3], 0
    // Predicated region
    $region2: #{simple_nn_forward.1} parent=1 // pred_check
      _
    $region3: #{simple_nn_forward.1} parent=1 // pred_check_branch
      %9 = sbr.rel (0) target = $region5
    $region4: #{simple_nn_forward.1} parent=1 // pred_region
      %s11 = ssub.s32 16, 16
      %12 = vsyncadd [#allocation3], %s11
      %s14 = sshll.u32 %s0, 4
      %s15 = int_to_ptr.vmem [resolvable:$true] %s14
      %17 = dma.vmem_to_smem %s15, 16, [#allocation2], [#allocation3]
    $region5: #{simple_nn_forward.1} parent=1 // pred_fallthru
      _
    // Predicated region
    $region6: #{simple_nn_forward.1} parent=1 // pred_check
      _
    $region7: #{simple_nn_forward.1} parent=1 // pred_check_branch
      %19 = sbr.rel (0) target = $region9
    $region8: #{simple_nn_forward.1} parent=1 // pred_region
      _
    $region9: #{simple_nn_forward.1} parent=1 // pred_fallthru
      _
    // Predicated region
    $region10: #{simple_nn_forward.1} parent=1 // pred_check
      _
    $region11: #{simple_nn_forward.1} parent=1 // pred_check_branch
      %21 = sbr.rel (0) target = $region13
    $region12: #{simple_nn_forward.1} parent=1 // pred_region
      %22 = dma.done [#allocation3], 16
    $region13: #{simple_nn_forward.1} parent=1 // pred_fallthru
      _
    %23 = sfence
    %v24 = vld [vmem:[%s1] sm:$0xff]
    %v25 = vld [vmem:[%s1 + $0x8] sm:$0xff]
    %v26 = vld [vmem:[%s1 + $0x10] sm:$0xff]
    %v27 = vld [vmem:[%s1 + $0x18] sm:$0xff]
    %s28 = scalar_lea.vmem %s1, 32
    %v29 = vld [vmem:[%s28] sm:$0xff]
    %v30 = vld [vmem:[%s28 + $0x8] sm:$0xff]
    %v31 = vld [vmem:[%s28 + $0x10] sm:$0xff]
    %v32 = vld [vmem:[%s28 + $0x18] sm:$0xff]
    %s33 = scalar_lea.vmem %s1, 64
    %v34 = vld [vmem:[%s33] sm:$0xff]
    %v35 = vld [vmem:[%s33 + $0x8] sm:$0xff]
    %v36 = vld [vmem:[%s33 + $0x10] sm:$0xff]
    %v37 = vld [vmem:[%s33 + $0x18] sm:$0xff]
    %s38 = sld [smem:[#allocation2]]
    %s39 = sld [smem:[#allocation2 + $0x1]]
    %s40 = sld [smem:[#allocation2 + $0x2]]
    %s41 = sld [smem:[#allocation2 + $0x3]]
    %s42 = sld [smem:[#allocation2 + $0x4]]
    %s43 = sld [smem:[#allocation2 + $0x5]]
    %s44 = sld [smem:[#allocation2 + $0x6]]
    %s45 = sld [smem:[#allocation2 + $0x7]]
    %s46 = sld [smem:[#allocation2 + $0x8]]
    %s47 = sld [smem:[#allocation2 + $0x9]]
    %s48 = sld [smem:[#allocation2 + $0xa]]
    %v49 = vstv %s38
    %v50 = vmul.f32 %v24, %v49
    %v51 = vmul.f32 %v25, %v49
    %v52 = vmul.f32 %v26, %v49
    %v53 = vmul.f32 %v27, %v49
    %v54 = vstv %s40
    %v55 = vmul.f32 %v29, %v54
    %v56 = vmul.f32 %v30, %v54
    %v57 = vmul.f32 %v31, %v54
    %v58 = vmul.f32 %v32, %v54
    %v59 = vadd.f32 %v50, %v55
    %v60 = vadd.f32 %v51, %v56
    %v61 = vadd.f32 %v52, %v57
    %v62 = vadd.f32 %v53, %v58
    %v63 = vstv %s42
    %v64 = vmul.f32 %v34, %v63
    %v65 = vmul.f32 %v35, %v63
    %v66 = vmul.f32 %v36, %v63
    %v67 = vmul.f32 %v37, %v63
    %v68 = vadd.f32 %v59, %v64
    %v69 = vadd.f32 %v60, %v65
    %v70 = vadd.f32 %v61, %v66
    %v71 = vadd.f32 %v62, %v67
    %v72 = vstv %s44
    %v73 = vadd.f32 %v68, %v72
    %v74 = vadd.f32 %v69, %v72
    %v75 = vadd.f32 %v70, %v72
    %v76 = vadd.f32 %v71, %v72
    %v77 = vxor.u32 %v73, 2147483648
    %v78 = vxor.u32 %v74, 2147483648
    %v79 = vxor.u32 %v75, 2147483648
    %v80 = vxor.u32 %v76, 2147483648
    %v81 = vmul.f32 %v77, 1.442695
    %v82 = vpow.pop %v81
    %v83 = vmul.f32 %v78, 1.442695
    %v84 = vpow.pop %v83
    %v85 = vmul.f32 %v79, 1.442695
    %v86 = vpow.pop %v85
    %v87 = vmul.f32 %v80, 1.442695
    %v88 = vpow.pop %v87
    %v89 = vadd.f32 %v82, 1.0
    %v90 = vadd.f32 %v84, 1.0
    %v91 = vadd.f32 %v86, 1.0
    %v92 = vadd.f32 %v88, 1.0
    %v93 = vrcp.pop %v89
    %v94 = vmul.f32 1.0, %v93
    %v95 = vrcp.pop %v90
    %v96 = vmul.f32 1.0, %v95
    %v97 = vrcp.pop %v91
    %v98 = vmul.f32 1.0, %v97
    %v99 = vrcp.pop %v92
    %v100 = vmul.f32 1.0, %v99
    %v101 = vstv %s39
    %v102 = vmul.f32 %v24, %v101
    %v103 = vmul.f32 %v25, %v101
    %v104 = vmul.f32 %v26, %v101
    %v105 = vmul.f32 %v27, %v101
    %v106 = vstv %s41
    %v107 = vmul.f32 %v29, %v106
    %v108 = vmul.f32 %v30, %v106
    %v109 = vmul.f32 %v31, %v106
    %v110 = vmul.f32 %v32, %v106
    %v111 = vadd.f32 %v102, %v107
    %v112 = vadd.f32 %v103, %v108
    %v113 = vadd.f32 %v104, %v109
    %v114 = vadd.f32 %v105, %v110
    %v115 = vstv %s43
    %v116 = vmul.f32 %v34, %v115
    %v117 = vmul.f32 %v35, %v115
    %v118 = vmul.f32 %v36, %v115
    %v119 = vmul.f32 %v37, %v115
    %v120 = vadd.f32 %v111, %v116
    %v121 = vadd.f32 %v112, %v117
    %v122 = vadd.f32 %v113, %v118
    %v123 = vadd.f32 %v114, %v119
    %v124 = vstv %s45
    %v125 = vadd.f32 %v120, %v124
    %v126 = vadd.f32 %v121, %v124
    %v127 = vadd.f32 %v122, %v124
    %v128 = vadd.f32 %v123, %v124
    %v129 = vxor.u32 %v125, 2147483648
    %v130 = vxor.u32 %v126, 2147483648
    %v131 = vxor.u32 %v127, 2147483648
    %v132 = vxor.u32 %v128, 2147483648
    %v133 = vmul.f32 %v129, 1.442695
    %v134 = vpow.pop %v133
    %v135 = vmul.f32 %v130, 1.442695
    %v136 = vpow.pop %v135
    %v137 = vmul.f32 %v131, 1.442695
    %v138 = vpow.pop %v137
    %v139 = vmul.f32 %v132, 1.442695
    %v140 = vpow.pop %v139
    %v141 = vadd.f32 %v134, 1.0
    %v142 = vadd.f32 %v136, 1.0
    %v143 = vadd.f32 %v138, 1.0
    %v144 = vadd.f32 %v140, 1.0
    %v145 = vrcp.pop %v141
    %v146 = vmul.f32 1.0, %v145
    %v147 = vrcp.pop %v142
    %v148 = vmul.f32 1.0, %v147
    %v149 = vrcp.pop %v143
    %v150 = vmul.f32 1.0, %v149
    %v151 = vrcp.pop %v144
    %v152 = vmul.f32 1.0, %v151
    %v153 = vstv %s46
    %v154 = vmul.f32 %v94, %v153
    %v155 = vmul.f32 %v96, %v153
    %v156 = vmul.f32 %v98, %v153
    %v157 = vmul.f32 %v100, %v153
    %v158 = vstv %s47
    %v159 = vmul.f32 %v146, %v158
    %v160 = vmul.f32 %v148, %v158
    %v161 = vmul.f32 %v150, %v158
    %v162 = vmul.f32 %v152, %v158
    %v163 = vadd.f32 %v154, %v159
    %v164 = vadd.f32 %v155, %v160
    %v165 = vadd.f32 %v156, %v161
    %v166 = vadd.f32 %v157, %v162
    %v167 = vstv %s48
    %v168 = vadd.f32 %v163, %v167
    %v169 = vadd.f32 %v164, %v167
    %v170 = vadd.f32 %v165, %v167
    %v171 = vadd.f32 %v166, %v167
    %v172 = vxor.u32 %v168, 2147483648
    %v173 = vxor.u32 %v169, 2147483648
    %v174 = vxor.u32 %v170, 2147483648
    %v175 = vxor.u32 %v171, 2147483648
    %v176 = vmul.f32 %v172, 1.442695
    %v177 = vpow.pop %v176
    %v178 = vmul.f32 %v173, 1.442695
    %v179 = vpow.pop %v178
    %v180 = vmul.f32 %v174, 1.442695
    %v181 = vpow.pop %v180
    %v182 = vmul.f32 %v175, 1.442695
    %v183 = vpow.pop %v182
    %v184 = vadd.f32 %v177, 1.0
    %v185 = vadd.f32 %v179, 1.0
    %v186 = vadd.f32 %v181, 1.0
    %v187 = vadd.f32 %v183, 1.0
    %v188 = vrcp.pop %v184
    %v189 = vmul.f32 1.0, %v188
    %v190 = vrcp.pop %v185
    %v191 = vmul.f32 1.0, %v190
    %v192 = vrcp.pop %v186
    %v193 = vmul.f32 1.0, %v192
    %v194 = vrcp.pop %v187
    %v195 = vmul.f32 1.0, %v194
    %196 = vst [vmem:[%s2] sm:$0xff] %v189
    %197 = vst [vmem:[%s2 + $0x8] sm:$0xff] %v191
    %198 = vst [vmem:[%s2 + $0x10] sm:$0xff] %v193
    %199 = vst [vmem:[%s2 + $0x18] sm:$0xff] %v195
    // Predicated region
    $region14: #{simple_nn_forward.1} parent=1 // pred_check
      _
    $region15: #{simple_nn_forward.1} parent=1 // pred_check_branch
      %201 = sbr.rel (0) target = $region17
    $region16: #{simple_nn_forward.1} parent=1 // pred_region
      _
    $region17: #{simple_nn_forward.1} parent=1 // pred_fallthru
      _
    // Predicated region
    $region18: #{simple_nn_forward.1} parent=1 // pred_check
      _
    $region19: #{simple_nn_forward.1} parent=1 // pred_check_branch
      %203 = sbr.rel (0) target = $region21
    $region20: #{simple_nn_forward.1} parent=1 // pred_region
      _
    $region21: #{simple_nn_forward.1} parent=1 // pred_fallthru
      _
    %204 = vsyncpa [#allocation3], 1

</llo_original>
